<compile_context>
chip_gen: v7x
topology: tpu7x:2x2x1
jax: 0.10.0
libtpu: 0.0.40
codegen_flags: <defaults>
</compile_context>

<pallas_src>
import jax
import jax.numpy as jnp
from jax import lax
from jax.experimental import pallas as pl
from jax.experimental.pallas import tpu as pltpu


EPS = 1e-4  # module default

# Tile-size ceilings (re-derived to fit every generation's scoped VMEM,
# including v7x's 64 MiB physical VMEM): tri tile <= 1 MiB, x/out tiles ~0.5 MiB.
_TILE_R_MAX = 256
_TILE_T_MAX = 512


def _round_up(v, m):
    return ((v + m - 1) // m) * m


def _cum_norm_kernel(tri_ref, invc_ref, x_ref, o_ref, carry_ref):
    """One (TILE_R, TILE_T) tile of the (rows, time) problem.

    tri_ref   : (TILE_T, TILE_T) f32, upper-triangular ones (VMEM-resident)
    invc_ref  : (1, TILE_T)      f32, 1/count for this time tile
    x_ref     : (TILE_R, TILE_T) input tile
    o_ref     : (TILE_R, TILE_T) output tile
    carry_ref : (2*TILE_R, 1)    f32 scratch, running [cum_sum; cum_pow_sum]
    """
    t = pl.program_id(1)

    # Reset the running sums at the start of each row-tile's time sweep.
    @pl.when(t == 0)
    def _():
        carry_ref[...] = jnp.zeros_like(carry_ref)

    x = x_ref[...].astype(jnp.float32)          # square in f32 (precision)
    tile_r = x.shape[0]

    # Fused MXU pass: stack x and x^2 along rows, one matmul vs. triangular.
    stacked = jnp.concatenate([x, x * x], axis=0)              # (2R, T_t)
    cum = jnp.dot(stacked, tri_ref[...],
                  preferred_element_type=jnp.float32)          # intra-tile cumsum
    cum = cum + carry_ref[...]                                 # add running totals
    carry_ref[...] = cum[:, -1:]                               # carry to next tile

    cum_sum = cum[:tile_r]
    cum_pow_sum = cum[tile_r:]

    inv_count = invc_ref[...]                                  # (1, TILE_T)
    cum_mean = cum_sum * inv_count
    cum_var = cum_pow_sum * inv_count - cum_mean * cum_mean
    inv_std = lax.rsqrt(cum_var + EPS)                         # EUP rsqrt

    o_ref[...] = ((x - cum_mean) * inv_std).astype(o_ref.dtype)


def cumulative_normalizer(x):
    """x: (B, C, T) array. Returns cumulatively-normalized array, same shape/dtype."""
    B, C, T = x.shape
    R = B * C

    tile_r = min(_round_up(R, 8), _TILE_R_MAX)
    tile_t = min(_round_up(T, 128), _TILE_T_MAX)
    r_pad = _round_up(R, tile_r)
    t_pad = _round_up(T, tile_t)

    x2d = x.reshape(R, T)
    if (r_pad, t_pad) != (R, T):
        # Zero-padding the tail of the time axis does not perturb earlier
        # cumulative sums (causal), and padded rows are discarded below.
        x2d = jnp.pad(x2d, ((0, r_pad - R), (0, t_pad - T)))

    # Per-tile upper-triangular ones: (x @ tri)[r, t] = sum_{s<=t} x[r, s].
    tri = jnp.triu(jnp.ones((tile_t, tile_t), jnp.float32))
    # 1 / count for the whole (padded) time axis, blocked per time tile.
    inv_count = (1.0 / jnp.arange(1, t_pad + 1, dtype=jnp.float32)).reshape(1, t_pad)

    grid = (r_pad // tile_r, t_pad // tile_t)

    out2d = pl.pallas_call(
        _cum_norm_kernel,
        out_shape=jax.ShapeDtypeStruct((r_pad, t_pad), x.dtype),
        grid_spec=pltpu.PrefetchScalarGridSpec(
            num_scalar_prefetch=0,
            grid=grid,
            in_specs=[
                # Constant index_map -> tri stays resident in VMEM.
                pl.BlockSpec((tile_t, tile_t), lambda i, t: (0, 0)),
                pl.BlockSpec((1, tile_t), lambda i, t: (0, t)),
                pl.BlockSpec((tile_r, tile_t), lambda i, t: (i, t)),
            ],
            out_specs=pl.BlockSpec((tile_r, tile_t), lambda i, t: (i, t)),
            scratch_shapes=[pltpu.VMEM((2 * tile_r, 1), jnp.float32)],
        ),
        compiler_params=pltpu.CompilerParams(
            dimension_semantics=("parallel", "arbitrary"),
        ),
        # Output reuses the padded input's HBM buffer (same shape/dtype).
        input_output_aliases={2: 0},
    )(tri, inv_count, x2d)

    return out2d[:R, :T].reshape(B, C, T)


def _reference(x):
    # Pure-JAX reference mirroring the PyTorch forward.
    T = x.shape[-1]
    cum_sum = jnp.cumsum(x, axis=-1)
    cum_pow_sum = jnp.cumsum(x ** 2, axis=-1)
    count = jnp.arange(1, T + 1, dtype=x.dtype).reshape(1, 1, T)
    cum_mean = cum_sum / count
    cum_var = cum_pow_sum / count - cum_mean ** 2
    cum_std = jnp.sqrt(cum_var + EPS)
    return (x - cum_mean) / cum_std


if __name__ == "__main__":
    key = jax.random.PRNGKey(0)
    B, C, T = 2, 4, 16
    x = jax.random.normal(key, (B, C, T), dtype=jnp.float32)

    out = cumulative_normalizer(x)
    out = jax.block_until_ready(out)

    ref = _reference(x)
    assert out.shape == (B, C, T)
    assert out.dtype == x.dtype
    assert jnp.allclose(out, ref, atol=1e-4, rtol=1e-4)

    print("KERNEL_OK")
</pallas_src>

<mosaic_0001>
module attributes {stable_mosaic.version = 11 : i64} {
  func.func @_cum_norm_kernel(%arg0: i32, %arg1: i32, %arg2: memref<128x128xf32, #tpu.memory_space<vmem>>, %arg3: memref<1x128xf32, #tpu.memory_space<vmem>>, %arg4: memref<8x128xf32, #tpu.memory_space<vmem>>, %arg5: memref<8x128xf32, #tpu.memory_space<vmem>>, %arg6: memref<16x1xf32, #tpu.memory_space<vmem>>) attributes {dimension_semantics = [#tpu.dimension_semantics<parallel>, #tpu.dimension_semantics<arbitrary>], iteration_bounds = array<i64: 1, 1>, scalar_prefetch = 0 : i64, scratch_operands = 1 : i64, tpu.core_type = #tpu.core_type<tc>, window_params = [{pipeline_mode = #tpu.pipeline_mode<synchronous>, transform_indices = @transform_0, window_bounds = array<i64: 128, 128>}, {transform_indices = @transform_1, window_bounds = array<i64: 1, 128>}, {transform_indices = @transform_2, window_bounds = array<i64: 8, 128>}, {transform_indices = @transform_3, window_bounds = array<i64: 8, 128>}]} {
    %c0_i32 = arith.constant 0 : i32
    %0 = arith.cmpi eq, %arg1, %c0_i32 : i32
    %1 = arith.extui %0 : i1 to i32
    %c0_i32_0 = arith.constant 0 : i32
    %2 = arith.cmpi ne, %1, %c0_i32_0 : i32
    scf.if %2 {
      %cst_13 = arith.constant 0.000000e+00 : f32
      %28 = vector.broadcast %cst_13 : f32 to vector<16x1xf32>
      %c0_14 = arith.constant 0 : index
      %c0_15 = arith.constant 0 : index
      %29 = vector.load %arg6[%c0_14, %c0_15] : memref<16x1xf32, #tpu.memory_space<vmem>>, vector<16x1xf32>
      tpu.vector_store %arg6[%c0_14, %c0_15], %28 {strides = array<i32>} : memref<16x1xf32, #tpu.memory_space<vmem>>, vector<16x1xf32>,
    } else {
    }
    %c0 = arith.constant 0 : index
    %c0_1 = arith.constant 0 : index
    %3 = vector.load %arg4[%c0, %c0_1] : memref<8x128xf32, #tpu.memory_space<vmem>>, vector<8x128xf32>
    %4 = arith.mulf %3, %3 : vector<8x128xf32>
    %5 = tpu.concatenate %3, %4 in 0 : vector<8x128xf32>, vector<8x128xf32> -> vector<16x128xf32>
    %c0_2 = arith.constant 0 : index
    %c0_3 = arith.constant 0 : index
    %6 = vector.load %arg2[%c0_2, %c0_3] : memref<128x128xf32, #tpu.memory_space<vmem>>, vector<128x128xf32>
    %cst = arith.constant dense<0.000000e+00> : vector<16x128xf32>
    %7 = tpu.matmul %5, %6, %cst {dimension_numbers = #tpu.dot_dimension_numbers<[1], [0], [0], [1], [0, 0, 1, 1], [], []>} : vector<16x128xf32>, vector<128x128xf32>, vector<16x128xf32> -> vector<16x128xf32>
    %c0_4 = arith.constant 0 : index
    %c0_5 = arith.constant 0 : index
    %8 = vector.load %arg6[%c0_4, %c0_5] : memref<16x1xf32, #tpu.memory_space<vmem>>, vector<16x1xf32>
    %9 = vector.broadcast %8 : vector<16x1xf32> to vector<16x128xf32>
    %10 = arith.addf %7, %9 : vector<16x128xf32>
    %11 = vector.extract_strided_slice %10 {offsets = [0, 127], sizes = [16, 1], strides = [1, 1]} : vector<16x128xf32> to vector<16x1xf32>
    %c0_6 = arith.constant 0 : index
    %c0_7 = arith.constant 0 : index
    %12 = vector.load %arg6[%c0_6, %c0_7] : memref<16x1xf32, #tpu.memory_space<vmem>>, vector<16x1xf32>
    tpu.vector_store %arg6[%c0_6, %c0_7], %11 {strides = array<i32>} : memref<16x1xf32, #tpu.memory_space<vmem>>, vector<16x1xf32>,
    %13 = vector.extract_strided_slice %10 {offsets = [0, 0], sizes = [8, 128], strides = [1, 1]} : vector<16x128xf32> to vector<8x128xf32>
    %14 = vector.extract_strided_slice %10 {offsets = [8, 0], sizes = [8, 128], strides = [1, 1]} : vector<16x128xf32> to vector<8x128xf32>
    %c0_8 = arith.constant 0 : index
    %c0_9 = arith.constant 0 : index
    %15 = vector.load %arg3[%c0_8, %c0_9] : memref<1x128xf32, #tpu.memory_space<vmem>>, vector<1x128xf32>
    %16 = vector.broadcast %15 : vector<1x128xf32> to vector<8x128xf32>
    %17 = arith.mulf %13, %16 : vector<8x128xf32>
    %18 = vector.broadcast %15 : vector<1x128xf32> to vector<8x128xf32>
    %19 = arith.mulf %14, %18 : vector<8x128xf32>
    %20 = arith.mulf %17, %17 : vector<8x128xf32>
    %21 = arith.subf %19, %20 : vector<8x128xf32>
    %cst_10 = arith.constant 9.99999974E-5 : f32
    %22 = vector.broadcast %cst_10 : f32 to vector<8x128xf32>
    %23 = arith.addf %21, %22 : vector<8x128xf32>
    %24 = math.rsqrt %23 : vector<8x128xf32>
    %25 = arith.subf %3, %17 : vector<8x128xf32>
    %26 = arith.mulf %25, %24 : vector<8x128xf32>
    %c0_11 = arith.constant 0 : index
    %c0_12 = arith.constant 0 : index
    %27 = vector.load %arg5[%c0_11, %c0_12] : memref<8x128xf32, #tpu.memory_space<vmem>>, vector<8x128xf32>
    tpu.vector_store %arg5[%c0_11, %c0_12], %26 {strides = array<i32>} : memref<8x128xf32, #tpu.memory_space<vmem>>, vector<8x128xf32>,
    return
  }
  func.func @transform_0(%arg0: i32, %arg1: i32) -> (i32, i32) {
    %c0_i32 = arith.constant 0 : i32
    %c0_i32_0 = arith.constant 0 : i32
    %c0_i32_1 = arith.constant 0 : i32
    return %c0_i32, %c0_i32_0 : i32, i32
  }
  func.func @transform_1(%arg0: i32, %arg1: i32) -> (i32, i32) {
    %c0_i32 = arith.constant 0 : i32
    %c0_i32_0 = arith.constant 0 : i32
    return %c0_i32, %arg1 : i32, i32
  }
  func.func @transform_2(%arg0: i32, %arg1: i32) -> (i32, i32) {
    %c0_i32 = arith.constant 0 : i32
    return %arg0, %arg1 : i32, i32
  }
  func.func @transform_3(%arg0: i32, %arg1: i32) -> (i32, i32) {
    %c0_i32 = arith.constant 0 : i32
    return %arg0, %arg1 : i32, i32
  }
}

</mosaic_0001>

<llo_original>
// kernel: tpu_custom_call.1
$region0: #{tpu_custom_call.1}
  #allocation0 [shape = 'u32[]', space=smem, size = 0x4, offset = 0x4, fixed_abs, tag = 'smem constant byte address 0x4 - core index']
  #allocation1 [shape = 'u32[144,128]{1,0:T(1,128)}', space=vmem, size = 0x12000, scoped, tag = 'internal scratch']
  #allocation2 [shape = 'f32[16,1]{1,0:T(8,128)}', space=vmem, size = 0x2000, scoped, tag = 'scratch operand']
  %s0 = inlined_call_operand.hbm [shape: f32[128,128], index: 0, kind: input, shape index: {}]
  %s1 = inlined_call_operand.vmem [shape: f32[1,128], index: 1, kind: input, shape index: {}]
  %s2 = inlined_call_operand.hbm [shape: f32[8,128], index: 2, kind: input, shape index: {}, may-alias: {2,3}]
  %s3 = inlined_call_operand.hbm [shape: f32[8,128], index: 3, kind: output, shape index: {}, may-alias: {2,3}]
  %s4 = sld [smem:[#allocation0]]
  $region34: #{tpu_custom_call.1} parent=0
    _
  %s6 = ssub.s32 1, %s4
  %s7 = scalar_select 0, %s6, %s4
  $region1: #{tpu_custom_call.1} parent=0
    #allocation3 [shape = 'u8[65536]{0}', space=vmem, size = 0x10000, scoped, tag = 'input window, operand 0, single buffered']
    #allocation4 [shape = 's32[1]{0}', space=sflag, size = 0x4, scoped, tag = 'scoped memory for tpu_custom_call.1']
    #allocation5 [shape = 's32[1]{0}', space=sflag, size = 0x4, scoped, tag = 'scoped memory for tpu_custom_call.1']
    #allocation6 [shape = 'u8[4096]{0}', space=vmem, size = 0x1000, scoped, tag = 'input window, operand 2, single buffered']
    #allocation7 [shape = 's32[1]{0}', space=sflag, size = 0x4, scoped, tag = 'scoped memory for tpu_custom_call.1']
    #allocation8 [shape = 'u8[4096]{0}', space=vmem, size = 0x1000, scoped, tag = 'output window, operand 0, single buffered']
    %8 = vsyncpa [#allocation4], 0
    %9 = vsyncpa [#allocation7], 0
    %10 = vsyncpa [#allocation5], 0
    // Predicated region
    $region2: #{tpu_custom_call.1} parent=1 // pred_check
      _
    $region3: #{tpu_custom_call.1} parent=1 // pred_check_branch
      %12 = sbr.rel (0) target = $region5
    $region4: #{tpu_custom_call.1} parent=1 // pred_region
      %s14 = ssub.s32 2048, 2048
      %15 = vsyncadd [#allocation4], %s14
      %s16 = sshll.u32 [#allocation3], 4
      %s17 = int_to_ptr.vmem [resolvable:$true] %s16
      %22 = dma.hbm_to_vmem [thread:$0]  %s0, 2048, %s17, [#allocation4], 128, 128, 8
    $region5: #{tpu_custom_call.1} parent=1 // pred_fallthru
      _
    // Predicated region
    $region6: #{tpu_custom_call.1} parent=1 // pred_check
      _
    $region7: #{tpu_custom_call.1} parent=1 // pred_check_branch
      %24 = sbr.rel (0) target = $region9
    $region8: #{tpu_custom_call.1} parent=1 // pred_region
      _
    $region9: #{tpu_custom_call.1} parent=1 // pred_fallthru
      _
    // Predicated region
    $region10: #{tpu_custom_call.1} parent=1 // pred_check
      _
    $region11: #{tpu_custom_call.1} parent=1 // pred_check_branch
      %26 = sbr.rel (0) target = $region13
    $region12: #{tpu_custom_call.1} parent=1 // pred_region
      %s28 = ssub.s32 128, 128
      %29 = vsyncadd [#allocation7], %s28
      %s31 = sshll.u32 [#allocation6], 4
      %s32 = int_to_ptr.vmem [resolvable:$true] %s31
      %34 = dma.hbm_to_vmem [thread:$0]  %s2, 128, %s32, [#allocation7]
    $region13: #{tpu_custom_call.1} parent=1 // pred_fallthru
      _
    // Predicated region
    $region14: #{tpu_custom_call.1} parent=1 // pred_check
      _
    $region15: #{tpu_custom_call.1} parent=1 // pred_check_branch
      %36 = sbr.rel (0) target = $region17
    $region16: #{tpu_custom_call.1} parent=1 // pred_region
      %37 = dma.done [#allocation4], 2048
    $region17: #{tpu_custom_call.1} parent=1 // pred_fallthru
      _
    // Predicated region
    $region18: #{tpu_custom_call.1} parent=1 // pred_check
      _
    $region19: #{tpu_custom_call.1} parent=1 // pred_check_branch
      %39 = sbr.rel (0) target = $region21
    $region20: #{tpu_custom_call.1} parent=1 // pred_region
      %40 = dma.done [#allocation7], 128
    $region21: #{tpu_custom_call.1} parent=1 // pred_fallthru
      _
    %p41 = scmp.eq.s32.totalorder 0, 0
    // Predicated region
    $region22: #{tpu_custom_call.1} parent=1 // pred_check
      %p42 = pneg %p41
    $region23: #{tpu_custom_call.1} parent=1 // pred_check_branch
      %44 = sbr.rel (%p42) target = $region25
    $region24: #{tpu_custom_call.1} parent=1 // pred_region
      %vm45 = vcmask 7168
      %46 = vst.msk [vmem:[#allocation2] sm:$0xff] %vm45, 0.0
      %47 = vst.msk [vmem:[#allocation2 + $0x8] sm:$0xff] %vm45, 0.0
    $region25: #{tpu_custom_call.1} parent=1 // pred_fallthru
      _
    %v48 = vld [vmem:[#allocation6] sm:$0xff]
    %v49 = vmul.f32 %v48, %v48
    %v50 = vld [vmem:[#allocation3] sm:$0xff]
    %v51 = vld [vmem:[#allocation3 + $0x8] sm:$0xff]
    %v52 = vld [vmem:[#allocation3 + $0x10] sm:$0xff]
    %v53 = vld [vmem:[#allocation3 + $0x18] sm:$0xff]
    %v54 = vld [vmem:[#allocation3 + $0x20] sm:$0xff]
    %v55 = vld [vmem:[#allocation3 + $0x28] sm:$0xff]
    %v56 = vld [vmem:[#allocation3 + $0x30] sm:$0xff]
    %v57 = vld [vmem:[#allocation3 + $0x38] sm:$0xff]
    %v58 = vld [vmem:[#allocation3 + $0x40] sm:$0xff]
    %v59 = vld [vmem:[#allocation3 + $0x48] sm:$0xff]
    %v60 = vld [vmem:[#allocation3 + $0x50] sm:$0xff]
    %v61 = vld [vmem:[#allocation3 + $0x58] sm:$0xff]
    %v62 = vld [vmem:[#allocation3 + $0x60] sm:$0xff]
    %v63 = vld [vmem:[#allocation3 + $0x68] sm:$0xff]
    %v64 = vld [vmem:[#allocation3 + $0x70] sm:$0xff]
    %v65 = vld [vmem:[#allocation3 + $0x78] sm:$0xff]
    %v66 = vld [vmem:[#allocation2] sm:$0xff]
    %v67 = vld [vmem:[#allocation2 + $0x8] sm:$0xff]
    %69 = vset.pattern.permute.xlu0 0
    %70 = vperm.xlu0 %69, %v66
    %v71 = vpop.permute.xlu0 %70
    %74 = vset.pattern.permute.xlu0 0
    %75 = vperm.xlu0 %74, %v67
    %v76 = vpop.permute.xlu0 %75
    %78 = vmatprep.subr.mxu0 0.0
    %79 = vmatpush1.msra.mxu0 %v50
    %80 = vmatprep.subr.mxu0 0.0
    %81 = vmatpush1.msra.mxu0 %v51
    %82 = vmatprep.subr.mxu0 0.0
    %83 = vmatpush1.msra.mxu0 %v52
    %84 = vmatprep.subr.mxu0 0.0
    %85 = vmatpush1.msra.mxu0 %v53
    %86 = vmatprep.subr.mxu0 0.0
    %87 = vmatpush1.msra.mxu0 %v54
    %88 = vmatprep.subr.mxu0 0.0
    %89 = vmatpush1.msra.mxu0 %v55
    %90 = vmatprep.subr.mxu0 0.0
    %91 = vmatpush1.msra.mxu0 %v56
    %92 = vmatprep.subr.mxu0 0.0
    %93 = vmatpush1.msra.mxu0 %v57
    %94 = vmatprep.subr.mxu0 0.0
    %95 = vmatpush1.msra.mxu0 %v58
    %96 = vmatprep.subr.mxu0 0.0
    %97 = vmatpush1.msra.mxu0 %v59
    %98 = vmatprep.subr.mxu0 0.0
    %99 = vmatpush1.msra.mxu0 %v60
    %100 = vmatprep.subr.mxu0 0.0
    %101 = vmatpush1.msra.mxu0 %v61
    %102 = vmatprep.subr.mxu0 0.0
    %103 = vmatpush1.msra.mxu0 %v62
    %104 = vmatprep.subr.mxu0 0.0
    %105 = vmatpush1.msra.mxu0 %v63
    %106 = vmatprep.subr.mxu0 0.0
    %107 = vmatpush1.msra.mxu0 %v64
    %108 = vmatprep.subr.mxu0 0.0
    %109 = vmatpush1.msra.mxu0 %v65
    %110 = vmatprep.subr.mxu0 0.0
    %111 = vmatpush1.msra.mxu0 0.0
    %112 = vmatprep.subr.mxu0 0.0
    %113 = vmatpush1.msra.mxu0 0.0
    %114 = vmatprep.subr.mxu0 0.0
    %115 = vmatpush1.msra.mxu0 0.0
    %116 = vmatprep.subr.mxu0 0.0
    %117 = vmatpush1.msra.mxu0 0.0
    %118 = vmatprep.subr.mxu0 0.0
    %119 = vmatpush1.msra.mxu0 0.0
    %120 = vmatprep.subr.mxu0 0.0
    %121 = vmatpush1.msra.mxu0 0.0
    %122 = vmatprep.subr.mxu0 0.0
    %123 = vmatpush1.msra.mxu0 0.0
    %124 = vmatprep.subr.mxu0 0.0
    %125 = vmatpush1.msra.mxu0 0.0
    %126 = vmatprep.subr.mxu0 0.0
    %127 = vmatpush1.msra.mxu0 0.0
    %128 = vmatprep.subr.mxu0 0.0
    %129 = vmatpush1.msra.mxu0 0.0
    %130 = vmatprep.subr.mxu0 0.0
    %131 = vmatpush1.msra.mxu0 0.0
    %132 = vmatprep.subr.mxu0 0.0
    %133 = vmatpush1.msra.mxu0 0.0
    %134 = vmatprep.subr.mxu0 0.0
    %135 = vmatpush1.msra.mxu0 0.0
    %136 = vmatprep.subr.mxu0 0.0
    %137 = vmatpush1.msra.mxu0 0.0
    %138 = vmatprep.subr.mxu0 0.0
    %139 = vmatpush1.msra.mxu0 0.0
    %140 = vmatprep.subr.mxu0 0.0
    %141 = vmatpush1.msra.mxu0 0.0
    %142 = vmatprep.mubr.f32.mxu0 0.0
    %143 = vmatmul.mubr.f32.gmra.mrb[0].mxu0 %v48
    %v144 = vpop.f32.mrb[0].mxu0
    %v145 = vadd.f32 %v71, %v144
    %v146 = vpop.f32.mrb[0].mxu0
    %147 = vmatprep.mubr.f32.mxu0 0.0
    %148 = vmatmul.mubr.f32.gmra.mrb[0].mxu0 %v49
    %v149 = vpop.f32.mrb[0].mxu0
    %v150 = vadd.f32 %v76, %v149
    %v151 = vpop.f32.mrb[0].mxu0
    %152 = vdwg.mxu0
    %155 = vrot.lane.b32.xlu0 %v145, 1
    %v156 = vpop.permute.xlu0 %155
    %157 = vrot.lane.b32.xlu0 %v150, 1
    %v158 = vpop.permute.xlu0 %157
    %vm161 = vcmask 7168
    %162 = vst.msk [vmem:[#allocation2] sm:$0xff] %vm161, %v156
    %163 = vst.msk [vmem:[#allocation2 + $0x8] sm:$0xff] %vm161, %v158
    %v164 = vld [vmem:[%s1] sm:$0x1]
    %v166 = vlaneseq
    %v167 = vshrl.u32 %v166, 7
    %v168 = vsub.s32 0, %v167
    %v169 = vrot.slane %v164, %v168
    %v171 = vmul.f32 %v145, %v169
    %v172 = vmul.f32 %v150, %v169
    %v173 = vmul.f32 %v171, %v171
    %v174 = vsub.f32 %v172, %v173
    %v175 = vadd.f32 %v174, 0.0001
    %v176 = vrsqrt.pop %v175
    %v177 = vsub.f32 %v48, %v171
    %v178 = vmul.f32 %v177, %v176
    %179 = vst [vmem:[#allocation8] sm:$0xff] %v178
    // Predicated region
    $region26: #{tpu_custom_call.1} parent=1 // pred_check
      _
    $region27: #{tpu_custom_call.1} parent=1 // pred_check_branch
      %181 = sbr.rel (0) target = $region29
    $region28: #{tpu_custom_call.1} parent=1 // pred_region
      %s183 = ssub.s32 128, 128
      %184 = vsyncadd [#allocation5], %s183
      %s186 = sshll.u32 [#allocation8], 4
      %s187 = int_to_ptr.vmem [resolvable:$true] %s186
      %189 = dma.vmem_to_hbm [thread:$0]  %s187, 128, %s3, [#allocation5]
    $region29: #{tpu_custom_call.1} parent=1 // pred_fallthru
      _
    // Predicated region
    $region30: #{tpu_custom_call.1} parent=1 // pred_check
      _
    $region31: #{tpu_custom_call.1} parent=1 // pred_check_branch
      %191 = sbr.rel (0) target = $region33
    $region32: #{tpu_custom_call.1} parent=1 // pred_region
      %192 = dma.done [#allocation5], 128
    $region33: #{tpu_custom_call.1} parent=1 // pred_fallthru
      _
    %193 = vsyncpa [#allocation4], 1
    %194 = vsyncpa [#allocation7], 1
    %195 = vsyncpa [#allocation5], 1

</llo_original>
